<compile_context>
chip_gen: v5e
topology: v5e:2x2
jax: 0.10.0
libtpu: 0.0.40
codegen_flags: <defaults>
</compile_context>

<pallas_src>
import functools

import jax
import jax.numpy as jnp
from jax.experimental import pallas as pl
from jax.experimental.pallas import tpu as pltpu


def _round_up(x, m):
    return (x + m - 1) // m * m


def _fused_affine_kernel(x_ref, w_ref, b_ref, o_ref):
    # out = x @ W + b   (bf16 operands, f32 MXU accumulate, f32 bias add + store)
    o_ref[...] = (
        jnp.dot(x_ref[...], w_ref[...], preferred_element_type=jnp.float32)
        + b_ref[...]
    )


@functools.partial(jax.jit, static_argnames=("c_out",))
def _forward_impl(x_nchw, w_p, b_p, *, c_out):
    B, C_in, H, W = x_nchw.shape
    K, N_pad = w_p.shape
    assert (H, W) == (3, 3), "fc(C_out, C_out) after flatten requires a 3x3 input"
    assert C_in * H * W == K

    # ---- x layout: flatten, cast to bf16, pad batch only to a multiple of 16
    #      (bf16 packs 2 rows per sublane).  K stays un-padded.
    B_pad = _round_up(B, 16)
    x2 = x_nchw.reshape(B, K).astype(jnp.bfloat16)
    if B_pad != B:
        x2 = jnp.pad(x2, ((0, B_pad - B), (0, 0)))

    # ---- Tile selection.
    TN = 256 if N_pad % 256 == 0 else 128          # 256-wide MXU on v6e/v7x when possible
    TM = min(512, B_pad)
    # Conservative VMEM budget (fits v5e's 16 MiB default scoped VMEM and v7x's 64 MiB
    # physical): 2 x-buffers + 2 out-buffers + 1 weight buffer + bias.
    budget = 12 * 1024 * 1024

    def _vmem_bytes(tm):
        return 2 * (tm * K * 2 + tm * TN * 4) + K * TN * 2 + TN * 4

    while TM > 16 and _vmem_bytes(TM) > budget:
        TM = max(16, _round_up(TM // 2, 16))

    grid_m = pl.cdiv(B_pad, TM)                    # last block may be partial: OOB rows of
    grid_n = N_pad // TN                           # x are never stored back, OOB stores drop.

    # Weight/bias never re-DMA when there is a single N tile -> single-buffer them
    # (only bother when the block is big enough for VMEM to matter).
    wb_kwargs = {}
    if grid_n == 1 and K * TN * 2 > (1 << 20):
        wb_kwargs = dict(pipeline_mode=pl.Buffered(1))

    cost = pl.CostEstimate(
        flops=2 * B_pad * K * N_pad,
        transcendentals=0,
        bytes_accessed=(B_pad * K * 2 + K * N_pad * 2 + N_pad * 4 + B_pad * N_pad * 4),
    )

    out_p = pl.pallas_call(
        _fused_affine_kernel,
        out_shape=jax.ShapeDtypeStruct((B_pad, N_pad), jnp.float32),
        grid=(grid_m, grid_n),
        in_specs=[
            pl.BlockSpec((TM, K), lambda i, j: (i, 0)),                 # x batch tile
            pl.BlockSpec((K, TN), lambda i, j: (0, j), **wb_kwargs),    # folded weight
            pl.BlockSpec((1, TN), lambda i, j: (0, j), **wb_kwargs),    # folded bias
        ],
        out_specs=pl.BlockSpec((TM, TN), lambda i, j: (i, j)),
        compiler_params=pltpu.CompilerParams(
            dimension_semantics=("parallel", "parallel"),               # shards across TCs on v7x
        ),
        cost_estimate=cost,
    )(x2, w_p, b_p)

    return out_p[:B, :c_out]


def make_dummy_model(conv_w, conv_b, fc_w, fc_b):
    """Fold conv+fc into one affine map and lay it out for the TPU ONCE (init time).

    conv_w : (C_out, C_in, 3, 3)   PyTorch Conv2d weight layout
    conv_b : (C_out,)
    fc_w   : (C_out, C_out)        PyTorch Linear weight layout (out x in)
    fc_b   : (C_out,)
    Returns a callable forward(x_nchw) -> (B, C_out) float32.
    """
    C_out, C_in, KH, KW = conv_w.shape
    K = C_in * KH * KW
    N_pad = _round_up(C_out, 128)

    wc = conv_w.reshape(C_out, K).T.astype(jnp.float32)            # (K, C_out)
    wf_t = fc_w.T.astype(jnp.float32)                              # (C_out, C_out)
    w_fold = wc @ wf_t                                             # (K, C_out)
    b_fold = conv_b.astype(jnp.float32) @ wf_t + fc_b.astype(jnp.float32)

    # Lane-pad C_out to 128 (zero columns), keep K un-padded, cast weight to bf16,
    # keep bias in f32.  This runs once; every forward reuses these arrays.
    w_p = (
        jnp.zeros((K, N_pad), jnp.bfloat16)
        .at[:, :C_out]
        .set(w_fold.astype(jnp.bfloat16))
    )
    b_p = jnp.zeros((1, N_pad), jnp.float32).at[:, :C_out].set(b_fold[None, :])
    w_p, b_p = jax.block_until_ready((w_p, b_p))

    def forward(x_nchw):
        return _forward_impl(x_nchw, w_p, b_p, c_out=C_out)

    return forward


def _reference_forward(x_nchw, conv_w, conv_b, fc_w, fc_b):
    # Pure f32 reference matching the PyTorch module semantics (3x3 input).
    conv_out = jnp.einsum("bchw,ochw->bo", x_nchw, conv_w) + conv_b   # (B, C_out)
    return conv_out @ fc_w.T + fc_b


if __name__ == "__main__":
    key = jax.random.PRNGKey(0)
    B, in_features, out_features = 2, 4, 8

    k_x, k_cw, k_cb, k_fw, k_fb = jax.random.split(key, 5)
    x = jax.random.normal(k_x, (B, in_features, 3, 3), dtype=jnp.float32)
    conv_w = jax.random.normal(k_cw, (out_features, in_features, 3, 3),
                               dtype=jnp.float32) * 0.1
    conv_b = jax.random.normal(k_cb, (out_features,), dtype=jnp.float32) * 0.1
    fc_w = jax.random.normal(k_fw, (out_features, out_features),
                             dtype=jnp.float32) * 0.1
    fc_b = jax.random.normal(k_fb, (out_features,), dtype=jnp.float32) * 0.1

    forward = make_dummy_model(conv_w, conv_b, fc_w, fc_b)   # fold/pad/cast happen here, once
    out = jax.block_until_ready(forward(x))

    ref = _reference_forward(x, conv_w, conv_b, fc_w, fc_b)
    assert out.shape == (B, out_features)
    # bf16 operands with f32 accumulation: loosen tolerance vs pure-f32 reference.
    assert jnp.allclose(out, ref, atol=1e-2, rtol=1e-2), (
        f"max abs err {jnp.max(jnp.abs(out - ref))}")

    print("KERNEL_OK")
</pallas_src>

<mosaic_0001>
module attributes {stable_mosaic.version = 11 : i64} {
  func.func @_fused_affine_kernel(%arg0: i32, %arg1: i32, %arg2: memref<16x36xbf16, #tpu.memory_space<vmem>>, %arg3: memref<36x128xbf16, #tpu.memory_space<vmem>>, %arg4: memref<1x128xf32, #tpu.memory_space<vmem>>, %arg5: memref<16x128xf32, #tpu.memory_space<vmem>>) attributes {dimension_semantics = [#tpu.dimension_semantics<parallel>, #tpu.dimension_semantics<parallel>], iteration_bounds = array<i64: 1, 1>, scalar_prefetch = 0 : i64, scratch_operands = 0 : i64, tpu.core_type = #tpu.core_type<tc>, window_params = [{transform_indices = @transform_0, window_bounds = array<i64: 16, 36>}, {transform_indices = @transform_1, window_bounds = array<i64: 36, 128>}, {transform_indices = @transform_2, window_bounds = array<i64: 1, 128>}, {transform_indices = @transform_3, window_bounds = array<i64: 16, 128>}]} {
    %c0 = arith.constant 0 : index
    %c0_0 = arith.constant 0 : index
    %0 = vector.load %arg2[%c0, %c0_0] : memref<16x36xbf16, #tpu.memory_space<vmem>>, vector<16x36xbf16>
    %c0_1 = arith.constant 0 : index
    %c0_2 = arith.constant 0 : index
    %1 = vector.load %arg3[%c0_1, %c0_2] : memref<36x128xbf16, #tpu.memory_space<vmem>>, vector<36x128xbf16>
    %cst = arith.constant dense<0.000000e+00> : vector<16x128xf32>
    %2 = tpu.matmul %0, %1, %cst {dimension_numbers = #tpu.dot_dimension_numbers<[1], [0], [0], [1], [0, 0, 1, 1], [], []>} : vector<16x36xbf16>, vector<36x128xbf16>, vector<16x128xf32> -> vector<16x128xf32>
    %c0_3 = arith.constant 0 : index
    %c0_4 = arith.constant 0 : index
    %3 = vector.load %arg4[%c0_3, %c0_4] : memref<1x128xf32, #tpu.memory_space<vmem>>, vector<1x128xf32>
    %4 = vector.broadcast %3 : vector<1x128xf32> to vector<16x128xf32>
    %5 = arith.addf %2, %4 : vector<16x128xf32>
    %c0_5 = arith.constant 0 : index
    %c0_6 = arith.constant 0 : index
    %6 = vector.load %arg5[%c0_5, %c0_6] : memref<16x128xf32, #tpu.memory_space<vmem>>, vector<16x128xf32>
    tpu.vector_store %arg5[%c0_5, %c0_6], %5 {strides = array<i32>} : memref<16x128xf32, #tpu.memory_space<vmem>>, vector<16x128xf32>,
    return
  }
  func.func @transform_0(%arg0: i32, %arg1: i32) -> (i32, i32) {
    %c0_i32 = arith.constant 0 : i32
    %c0_i32_0 = arith.constant 0 : i32
    return %arg0, %c0_i32 : i32, i32
  }
  func.func @transform_1(%arg0: i32, %arg1: i32) -> (i32, i32) {
    %c0_i32 = arith.constant 0 : i32
    %c0_i32_0 = arith.constant 0 : i32
    return %c0_i32, %arg1 : i32, i32
  }
  func.func @transform_2(%arg0: i32, %arg1: i32) -> (i32, i32) {
    %c0_i32 = arith.constant 0 : i32
    %c0_i32_0 = arith.constant 0 : i32
    return %c0_i32, %arg1 : i32, i32
  }
  func.func @transform_3(%arg0: i32, %arg1: i32) -> (i32, i32) {
    %c0_i32 = arith.constant 0 : i32
    return %arg0, %arg1 : i32, i32
  }
}

</mosaic_0001>

<llo_original>
// kernel: _forward_impl.1
$region0: #{_forward_impl.1}
  #allocation0 [shape = 'u32[]', space=smem, size = 0x4, offset = 0x4, fixed_abs, tag = 'smem constant byte address 0x4 - core index']
  #allocation1 [shape = 'u32[72,128]{1,0:T(1,128)}', space=vmem, size = 0x9000, scoped, tag = 'internal scratch']
  %s0 = inlined_call_operand.vmem [shape: bf16[16,36], index: 0, kind: input, shape index: {}]
  %s1 = inlined_call_operand.vmem [shape: bf16[36,128], index: 1, kind: input, shape index: {}]
  %s2 = inlined_call_operand.vmem [shape: f32[1,128], index: 2, kind: input, shape index: {}]
  %s3 = inlined_call_operand.vmem [shape: f32[16,128], index: 3, kind: output, shape index: {}]
  %s4 = sld [smem:[#allocation0]]
  $region22: #{_forward_impl.1} parent=0
    _
  %s6 = ssub.s32 1, %s4
  %s7 = scalar_select 0, %s6, %s4
  // Predicated region
  $region2: #{_forward_impl.1} parent=0 // pred_check
    _
  $region3: #{_forward_impl.1} parent=0 // pred_check_branch
    %9 = sbr.rel (0) target = $region5
  $region4: #{_forward_impl.1} parent=0 // pred_region
    _
  $region5: #{_forward_impl.1} parent=0 // pred_fallthru
    _
  // Predicated region
  $region6: #{_forward_impl.1} parent=0 // pred_check
    _
  $region7: #{_forward_impl.1} parent=0 // pred_check_branch
    %11 = sbr.rel (0) target = $region9
  $region8: #{_forward_impl.1} parent=0 // pred_region
    _
  $region9: #{_forward_impl.1} parent=0 // pred_fallthru
    _
  // Predicated region
  $region10: #{_forward_impl.1} parent=0 // pred_check
    _
  $region11: #{_forward_impl.1} parent=0 // pred_check_branch
    %13 = sbr.rel (0) target = $region13
  $region12: #{_forward_impl.1} parent=0 // pred_region
    _
  $region13: #{_forward_impl.1} parent=0 // pred_fallthru
    _
  %v15 = vld [vmem:[%s0] sm:$0xf]
  %v16 = vld [vmem:[%s0 + $0x4] sm:$0xf]
  %v17 = vld [vmem:[%s1] sm:$0xf]
  %v18 = vld [vmem:[%s1 + $0x4] sm:$0xf]
  %v19 = vld [vmem:[%s1 + $0x8] sm:$0xf]
  %v20 = vld [vmem:[%s1 + $0xc] sm:$0xf]
  %v21 = vld [vmem:[%s1 + $0x10] sm:$0x3]
  %v22 = vld [vmem:[%s2] sm:$0x1]
  %v24 = vperm.slane %v22, 0
  %v28 = vunpack.c.l.b16 %v15
  %v29 = vunpack.c.l.b16 %v16
  %v30 = vpack.c.b16 %v29, %v28
  %v36 = vunpack.c.l.b16 %v17
  %v37 = vunpack.c.l.b16 %v18
  %v38 = vunpack.c.l.b16 %v19
  %v39 = vunpack.c.l.b16 %v20
  %v40 = vunpack.c.l.b16 %v21
  %v41 = vpack.c.b16 %v37, %v36
  %v42 = vpack.c.b16 %v39, %v38
  %v43 = vpack.c.b16 %v40, %v40
  %vm46 = vcmask 293888
  %v48 = vsel %vm46, %v30, 0
  %vm50 = vcmask 1041408
  %v52 = vsel %vm50, %v43, 0
  %54 = vmatpush.bf16.msra.mxu0 0
  %55 = vmatpush.bf16.msra.mxu0 0
  %56 = vmatpush.bf16.msra.mxu0 0
  %57 = vmatpush.bf16.msra.mxu0 0
  %58 = vmatpush.bf16.msra.mxu0 0
  %59 = vmatpush.bf16.msra.mxu0 %v52
  %60 = vmatpush.bf16.msra.mxu0 %v42
  %61 = vmatpush.bf16.msra.mxu0 %v41
  %62 = vmatmul.bf16.gmra.mxu0 %v48
  %v63 = vpop.f32.mrf.mxu0
  %v64 = vadd.f32 %v24, %v63
  %v65 = vpop.f32.mrf.mxu0
  %v66 = vadd.f32 %v24, %v65
  %67 = vdwg.mxu0
  %68 = vst [vmem:[%s3] sm:$0xff] %v64
  %69 = vst [vmem:[%s3 + $0x8] sm:$0xff] %v66
  // Predicated region
  $region14: #{_forward_impl.1} parent=0 // pred_check
    _
  $region15: #{_forward_impl.1} parent=0 // pred_check_branch
    %71 = sbr.rel (0) target = $region17
  $region16: #{_forward_impl.1} parent=0 // pred_region
    _
  $region17: #{_forward_impl.1} parent=0 // pred_fallthru
    _
  // Predicated region
  $region18: #{_forward_impl.1} parent=0 // pred_check
    _
  $region19: #{_forward_impl.1} parent=0 // pred_check_branch
    %73 = sbr.rel (0) target = $region21
  $region20: #{_forward_impl.1} parent=0 // pred_region
    _
  $region21: #{_forward_impl.1} parent=0 // pred_fallthru
    _

</llo_original>
